<compile_context>
chip_gen: v7x
topology: tpu7x:2x2x1
jax: 0.10.0
libtpu: 0.0.40
codegen_flags: <defaults>
</compile_context>

<pallas_src>
import functools
import math

import jax
import jax.numpy as jnp
from jax.experimental import pallas as pl
from jax.experimental.pallas import tpu as pltpu


def _round_up(x, m):
    return (x + m - 1) // m * m


def _recip(x):
    """EUP approximate reciprocal refined with one Newton step (near-exact)."""
    r = pl.reciprocal(x, approx=True)
    return r * (2.0 - x * r)


def _moe_gate_kernel(x_ref, wt_ref, *out_refs, top_k, norm_topk_prob,
                     n_experts, n_tokens, seq_len, bsz, need_aux):
    """One token-tile of the MoE gate.

    x_ref:  (TM, H)       bf16 tile of flattened tokens
    wt_ref: (H,  E_pad)   bf16 pre-transposed router weight (expert axis lane-padded)
    outputs (all lane-dense):
      topk_w_ref  (TM, OUT_LANES) f32   top-k weights in lanes [0, K)
      topk_i_ref  (TM, OUT_LANES) i32   top-k expert ids in lanes [0, K)
      partial_ref (1, BSZ, E_pad) f32   per-batch partial score sums (aux only)
    """
    if need_aux:
        topk_w_ref, topk_i_ref, partial_ref = out_refs
    else:
        topk_w_ref, topk_i_ref = out_refs
        partial_ref = None

    tm = x_ref.shape[0]

    # logits = x @ W.T, with W.T materialized once outside the kernel (no
    # per-tile XLU transpose).  bf16 operands, f32 MXU accumulation.
    logits = jnp.dot(x_ref[...], wt_ref[...],
                     preferred_element_type=jnp.float32)          # (TM, E_pad)
    e_pad = logits.shape[-1]
    col_ids = jax.lax.broadcasted_iota(jnp.int32, logits.shape, 1)
    if e_pad > n_experts:
        # Padded experts must never be selected / receive probability mass.
        logits = jnp.where(col_ids < n_experts, logits, -jnp.inf)

    # Inference fast path: softmax is monotonic and its global denominator
    # cancels under top-k renormalization, so when the full scores are not
    # needed we run top-k directly on the logits and softmax only the K
    # selected values (skips the full-row exp / row-sum / reciprocal).
    fast_path = (not need_aux) and (top_k > 1) and norm_topk_prob

    scores = None
    if fast_path:
        sel = logits
        masked_val = -jnp.inf
    else:
        m = jnp.max(logits, axis=-1, keepdims=True)
        ex = jnp.exp(logits - m)
        scores = ex * _recip(jnp.sum(ex, axis=-1, keepdims=True))
        sel = scores
        masked_val = -1.0          # scores >= 0, so -1 excludes selected cols

    # Iterative top-k (K small & static): argmax, record, mask, repeat.
    # Ties break to the lowest expert index (matches lax.top_k / torch.topk).
    s = sel
    vals, idxs = [], []
    for _ in range(top_k):
        vmax = jnp.max(s, axis=-1, keepdims=True)                     # (TM, 1)
        imax = jnp.min(jnp.where(s == vmax, col_ids, e_pad),
                       axis=-1, keepdims=True)                        # (TM, 1)
        vals.append(vmax)
        idxs.append(imax)
        s = jnp.where(col_ids == imax, masked_val, s)

    if fast_path:
        # Softmax over just the K selected logits == renormalized top-k probs.
        lmax = vals[0]                                  # vals[0] is the row max
        exps = [jnp.exp(v - lmax) for v in vals]
        denom = exps[0]
        for e in exps[1:]:
            denom = denom + e
        inv = _recip(denom + 1e-20)
        w_vals = [e * inv for e in exps]
    else:
        w_vals = vals
        if top_k > 1 and norm_topk_prob:
            denom = w_vals[0]
            for v in w_vals[1:]:
                denom = denom + v
            inv = _recip(denom + 1e-20)
            w_vals = [v * inv for v in w_vals]

    # Lane-dense writeback: build full (TM, OUT_LANES) slabs with masked
    # selects; the wrapper slices [:, :top_k].
    out_lanes = topk_w_ref.shape[-1]
    lane = jax.lax.broadcasted_iota(jnp.int32, (tm, out_lanes), 1)
    out_w = jnp.zeros((tm, out_lanes), jnp.float32)
    out_i = jnp.zeros((tm, out_lanes), jnp.int32)
    for k in range(top_k):
        out_w = jnp.where(lane == k, w_vals[k], out_w)
        out_i = jnp.where(lane == k, idxs[k], out_i)
    topk_w_ref[...] = out_w
    topk_i_ref[...] = out_i

    if need_aux:
        # Per-batch partial sums of the softmax scores for the aux loss:
        # onehot[b, r] = 1 iff global row r belongs to batch b and is a real
        # (non-padded) token.  partial = onehot @ scores -> (BSZ, E_pad).
        row_g = (pl.program_id(0) * tm
                 + jax.lax.broadcasted_iota(jnp.int32, (bsz, tm), 1))
        b_id = jax.lax.broadcasted_iota(jnp.int32, (bsz, tm), 0)
        start = b_id * seq_len
        onehot = jnp.where((row_g >= start) & (row_g < start + seq_len)
                           & (row_g < n_tokens), 1.0, 0.0).astype(jnp.float32)
        partial_ref[0] = jnp.dot(onehot, scores,
                                 preferred_element_type=jnp.float32)


def _run_gate(x_pad, wt_pad, *, tm, out_lanes, top_k, norm_topk_prob,
              n_experts, n_tokens, seq_len, bsz, need_aux,
              vmem_limit_bytes, weight_pipeline_mode):
    n_tok_pad, h = x_pad.shape
    e_pad = wt_pad.shape[1]
    n_tiles = n_tok_pad // tm

    kernel = functools.partial(
        _moe_gate_kernel, top_k=top_k, norm_topk_prob=norm_topk_prob,
        n_experts=n_experts, n_tokens=n_tokens, seq_len=seq_len, bsz=bsz,
        need_aux=need_aux)

    w_kwargs = {}
    if weight_pipeline_mode is not None:
        w_kwargs["pipeline_mode"] = weight_pipeline_mode

    out_shape = [
        jax.ShapeDtypeStruct((n_tok_pad, out_lanes), jnp.float32),
        jax.ShapeDtypeStruct((n_tok_pad, out_lanes), jnp.int32),
    ]
    out_specs = [
        pl.BlockSpec((tm, out_lanes), lambda i: (i, 0)),
        pl.BlockSpec((tm, out_lanes), lambda i: (i, 0)),
    ]
    if need_aux:
        out_shape.append(
            jax.ShapeDtypeStruct((n_tiles, bsz, e_pad), jnp.float32))
        out_specs.append(pl.BlockSpec((1, bsz, e_pad), lambda i: (i, 0, 0)))

    return pl.pallas_call(
        kernel,
        out_shape=tuple(out_shape),
        grid_spec=pltpu.PrefetchScalarGridSpec(
            num_scalar_prefetch=0,
            grid=(n_tiles,),
            in_specs=[
                pl.BlockSpec((tm, h), lambda i: (i, 0)),
                # Loop-invariant router weight: block index never changes.
                pl.BlockSpec((h, e_pad), lambda i: (0, 0), **w_kwargs),
            ],
            out_specs=tuple(out_specs),
        ),
        compiler_params=pltpu.CompilerParams(
            dimension_semantics=("parallel",),
            vmem_limit_bytes=vmem_limit_bytes),
    )(x_pad, wt_pad)


def moe_gate_forward(hidden_states, weight, *, top_k, norm_topk_prob=True,
                     alpha=0.2, seq_aux=True, training=True):
    """Pallas implementation of MOEGate.forward.

    hidden_states: (bsz, seq_len, hidden)
    weight:        (n_routed_experts, hidden)
    Returns (topk_idx, topk_weight, aux_loss) matching the PyTorch module
    (router matmul runs with bf16 operands / f32 accumulation on the MXU).
    """
    bsz, seq_len, h = hidden_states.shape
    n_experts = weight.shape[0]
    n_tokens = bsz * seq_len

    # bf16 operands for the MXU; halves the x HBM stream of this
    # bandwidth-bound op (f32 accumulation is kept inside the kernel).
    compute_dtype = jnp.bfloat16
    x_flat = hidden_states.reshape(n_tokens, h).astype(compute_dtype)

    # Pre-transpose the router weight once (no in-kernel transpose) and pad
    # the expert axis to a lane-dense multiple of 128.
    e_pad = max(128, _round_up(n_experts, 128))
    wt = weight.T.astype(compute_dtype)
    if e_pad != n_experts:
        wt = jnp.pad(wt, ((0, 0), (0, e_pad - n_experts)))

    need_aux = bool(training and alpha > 0.0)
    out_lanes = max(128, _round_up(top_k, 128))

    # Generation-aware VMEM budget: 128-MiB-VMEM chips (v4/v5/v6) get a
    # ~100 MiB scoped limit; anything else (v7x: 64 MiB/TC, or unknown chips)
    # gets a conservative 48 MiB.
    kind = jax.devices()[0].device_kind.lower()
    big_vmem = any(tag in kind for tag in ("v4", "v5", "v6"))
    vmem_limit = (100 << 20) if big_vmem else (48 << 20)
    budget = vmem_limit - (4 << 20)            # headroom for compiler scratch

    ib = jnp.dtype(compute_dtype).itemsize

    def footprint(cand):
        return (2 * cand * h * ib                              # x tile (2 bufs)
                + 2 * e_pad * h * ib                           # weight (worst case 2 bufs)
                + 2 * cand * out_lanes * 4                     # topk_w out blocks
                + 2 * cand * out_lanes * 4                     # topk_i out blocks
                + (2 * bsz * e_pad * 4 if need_aux else 0)     # aux partial block
                + 6 * cand * e_pad * 4                         # logits/exp/scores/iota temps
                + (1 << 20))                                   # misc slack

    # Token tile: largest candidate that fits the budget AND leaves a grid of
    # length >= 2 so both v7x TensorCores get work on the "parallel" axis.
    tm = None
    for cand in (2048, 1024, 512, 256, 128):
        if n_tokens > cand and footprint(cand) <= budget:
            tm = cand
            break
    if tm is None:
        if n_tokens > 128:
            tm = 128
        else:
            # Few tokens: still split into two grid steps when possible.
            half = _round_up(-(-n_tokens // 2), 8)
            tm = half if half < n_tokens else max(8, _round_up(n_tokens, 8))

    n_tok_pad = _round_up(n_tokens, tm)
    x_pad = (x_flat if n_tok_pad == n_tokens
             else jnp.pad(x_flat, ((0, n_tok_pad - n_tokens), (0, 0))))

    run = functools.partial(
        _run_gate, tm=tm, out_lanes=out_lanes, top_k=top_k,
        norm_topk_prob=norm_topk_prob, n_experts=n_experts,
        n_tokens=n_tokens, seq_len=seq_len, bsz=bsz, need_aux=need_aux,
        vmem_limit_bytes=vmem_limit)

    # Single-buffer the loop-invariant weight when the runtime supports it.
    # Only specific lowering/validation failures trigger the fallback; any
    # other exception is a real bug and should surface.
    try:
        outs = run(x_pad, wt, weight_pipeline_mode=pl.Buffered(1))
    except (pltpu.LoweringException, NotImplementedError, ValueError,
            TypeError):
        outs = run(x_pad, wt, weight_pipeline_mode=None)

    if need_aux:
        topk_w, topk_i, partial = outs
    else:
        topk_w, topk_i = outs
        partial = None

    # Padded token rows / lanes are sliced off here.
    # TODO(synk): if a fused dispatch kernel ever consumes the padded slabs
    # directly, mask the padded rows' indices there too.
    topk_w = topk_w[:n_tokens, :top_k]
    topk_i = topk_i[:n_tokens, :top_k]

    # Auxiliary load-balancing loss: tiny O(bsz * n_experts) reduction from the
    # in-kernel per-batch partial sums (no full (N, E) scores HBM writeback).
    if need_aux:
        scores_sum = partial.sum(axis=0)[:, :n_experts]          # (bsz, E)
        idx_aux = topk_i.reshape(bsz, seq_len * top_k)
        ce = jnp.zeros((bsz, n_experts), jnp.float32)
        ce = ce.at[jnp.arange(bsz)[:, None], idx_aux].add(1.0)
        if seq_aux:
            ce = ce / (seq_len * top_k / n_experts)
            mean_scores = scores_sum / seq_len        # == scores.view(b,s,e).mean(1)
            aux_loss = (ce * mean_scores).sum(axis=1).mean() * alpha
        else:
            fi = ce.sum(axis=0) / (n_tokens * top_k) * n_experts
            pi = scores_sum.sum(axis=0) / n_tokens
            aux_loss = (pi * fi).sum() * alpha
    else:
        aux_loss = None

    return topk_i, topk_w, aux_loss


def _reference_forward(hidden_states, weight, *, top_k, norm_topk_prob,
                       alpha, seq_aux):
    """Plain-JAX reference (bf16 router matmul to match the kernel numerics)."""
    bsz, seq_len, h = hidden_states.shape
    n_experts = weight.shape[0]
    x = hidden_states.reshape(-1, h).astype(jnp.bfloat16)
    w = weight.astype(jnp.bfloat16)
    logits = jnp.dot(x, w.T, preferred_element_type=jnp.float32)
    scores = jax.nn.softmax(logits, axis=-1)
    topk_w, topk_i = jax.lax.top_k(scores, top_k)
    if top_k > 1 and norm_topk_prob:
        topk_w = topk_w / (topk_w.sum(axis=-1, keepdims=True) + 1e-20)
    scores_seq = scores.reshape(bsz, seq_len, n_experts)
    idx_aux = topk_i.reshape(bsz, seq_len * top_k)
    ce = jnp.zeros((bsz, n_experts), jnp.float32)
    ce = ce.at[jnp.arange(bsz)[:, None], idx_aux].add(1.0)
    ce = ce / (seq_len * top_k / n_experts)
    aux = (ce * scores_seq.mean(axis=1)).sum(axis=1).mean() * alpha
    return topk_i, topk_w, aux


if __name__ == "__main__":
    # Small configuration consistent with the module's forward.
    bsz, seq_len, hidden_size = 2, 8, 32
    n_routed_experts, top_k = 8, 2
    alpha, seq_aux, norm_topk_prob = 0.2, True, True

    key = jax.random.PRNGKey(0)
    k_x, k_w = jax.random.split(key)

    # kaiming_uniform_(a=sqrt(5)) -> U(-1/sqrt(fan_in), 1/sqrt(fan_in))
    bound = 1.0 / math.sqrt(hidden_size)
    weight = jax.random.uniform(k_w, (n_routed_experts, hidden_size),
                                jnp.float32, minval=-bound, maxval=bound)
    hidden_states = jax.random.normal(k_x, (bsz, seq_len, hidden_size),
                                      jnp.float32)

    # Training path (full softmax + in-kernel aux partial sums).
    topk_idx, topk_weight, aux_loss = moe_gate_forward(
        hidden_states, weight, top_k=top_k, norm_topk_prob=norm_topk_prob,
        alpha=alpha, seq_aux=seq_aux, training=True)
    jax.block_until_ready((topk_idx, topk_weight, aux_loss))

    # Inference fast path (no aux loss, softmax skipped in-kernel).
    inf_idx, inf_w, inf_aux = moe_gate_forward(
        hidden_states, weight, top_k=top_k, norm_topk_prob=norm_topk_prob,
        alpha=alpha, seq_aux=seq_aux, training=False)
    jax.block_until_ready((inf_idx, inf_w))

    ref_idx, ref_w, ref_aux = _reference_forward(
        hidden_states, weight, top_k=top_k, norm_topk_prob=norm_topk_prob,
        alpha=alpha, seq_aux=seq_aux)

    assert topk_idx.shape == (bsz * seq_len, top_k)
    assert topk_weight.shape == (bsz * seq_len, top_k)
    assert jnp.array_equal(jnp.sort(topk_idx, axis=-1),
                           jnp.sort(ref_idx, axis=-1)), "topk indices mismatch"
    assert jnp.allclose(topk_weight, ref_w, atol=5e-3, rtol=5e-3), \
        "topk weights mismatch"
    assert jnp.allclose(aux_loss, ref_aux, atol=5e-3, rtol=5e-3), \
        "aux loss mismatch"
    assert inf_aux is None
    assert jnp.array_equal(jnp.sort(inf_idx, axis=-1),
                           jnp.sort(ref_idx, axis=-1)), \
        "fast-path indices mismatch"
    assert jnp.allclose(inf_w, ref_w, atol=5e-3, rtol=5e-3), \
        "fast-path weights mismatch"

    print("KERNEL_OK")
</pallas_src>

<mosaic_0001>
module attributes {stable_mosaic.version = 11 : i64} {
  func.func @_moe_gate_kernel(%arg0: i32, %arg1: memref<8x32xbf16, #tpu.memory_space<vmem>>, %arg2: memref<32x128xbf16, #tpu.memory_space<vmem>>, %arg3: memref<8x128xf32, #tpu.memory_space<vmem>>, %arg4: memref<8x128xi32, #tpu.memory_space<vmem>>, %arg5: memref<1x2x128xf32, #tpu.memory_space<vmem>>) attributes {dimension_semantics = [#tpu.dimension_semantics<parallel>], iteration_bounds = array<i64: 2>, scalar_prefetch = 0 : i64, scratch_operands = 0 : i64, tpu.core_type = #tpu.core_type<tc>, window_params = [{transform_indices = @transform_0, window_bounds = array<i64: 8, 32>}, {pipeline_mode = #tpu.pipeline_mode<synchronous>, transform_indices = @transform_1, window_bounds = array<i64: 32, 128>}, {transform_indices = @transform_2, window_bounds = array<i64: 8, 128>}, {transform_indices = @transform_3, window_bounds = array<i64: 8, 128>}, {transform_indices = @transform_4, window_bounds = array<i64: 1, 2, 128>}]} {
    %c0 = arith.constant 0 : index
    %c0_0 = arith.constant 0 : index
    %0 = vector.load %arg1[%c0, %c0_0] : memref<8x32xbf16, #tpu.memory_space<vmem>>, vector<8x32xbf16>
    %c0_1 = arith.constant 0 : index
    %c0_2 = arith.constant 0 : index
    %1 = vector.load %arg2[%c0_1, %c0_2] : memref<32x128xbf16, #tpu.memory_space<vmem>>, vector<32x128xbf16>
    %cst = arith.constant dense<0.000000e+00> : vector<8x128xf32>
    %2 = tpu.matmul %0, %1, %cst {dimension_numbers = #tpu.dot_dimension_numbers<[1], [0], [0], [1], [0, 0, 1, 1], [], []>} : vector<8x32xbf16>, vector<32x128xbf16>, vector<8x128xf32> -> vector<8x128xf32>
    %3 = tpu.iota {dimensions = array<i32: 1>} : vector<8x128xi32>
    %c8_i32 = arith.constant 8 : i32
    %4 = vector.broadcast %c8_i32 : i32 to vector<8x128xi32>
    %5 = arith.cmpi slt, %3, %4 : vector<8x128xi32>
    %cst_3 = arith.constant 0xFF800000 : f32
    %6 = vector.broadcast %cst_3 : f32 to vector<8x128xf32>
    %7 = arith.select %5, %2, %6 : vector<8x128xi1>, vector<8x128xf32>
    %cst_4 = arith.constant dense<0xFF800000> : vector<8xf32>
    %8 = vector.multi_reduction <maximumf>, %7, %cst_4 [1] : vector<8x128xf32> to vector<8xf32>
    %9 = vector.shape_cast %8 : vector<8xf32> to vector<8x1xf32>
    %10 = vector.broadcast %9 : vector<8x1xf32> to vector<8x128xf32>
    %11 = arith.subf %7, %10 : vector<8x128xf32>
    %12 = math.exp %11 : vector<8x128xf32>
    %cst_5 = arith.constant dense<0.000000e+00> : vector<8xf32>
    %13 = vector.multi_reduction <add>, %12, %cst_5 [1] : vector<8x128xf32> to vector<8xf32>
    %14 = vector.shape_cast %13 : vector<8xf32> to vector<8x1xf32>
    %15 = tpu.reciprocal %14 {approx = true} : vector<8x1xf32> -> vector<8x1xf32>
    %16 = arith.mulf %14, %15 : vector<8x1xf32>
    %cst_6 = arith.constant 2.000000e+00 : f32
    %17 = vector.broadcast %cst_6 : f32 to vector<8x1xf32>
    %18 = arith.subf %17, %16 : vector<8x1xf32>
    %19 = arith.mulf %15, %18 : vector<8x1xf32>
    %20 = vector.broadcast %19 : vector<8x1xf32> to vector<8x128xf32>
    %21 = arith.mulf %12, %20 : vector<8x128xf32>
    %cst_7 = arith.constant dense<0xFF800000> : vector<8xf32>
    %22 = vector.multi_reduction <maximumf>, %21, %cst_7 [1] : vector<8x128xf32> to vector<8xf32>
    %23 = vector.shape_cast %22 : vector<8xf32> to vector<8x1xf32>
    %24 = vector.broadcast %23 : vector<8x1xf32> to vector<8x128xf32>
    %25 = arith.cmpf oeq, %21, %24 : vector<8x128xf32>
    %c128_i32 = arith.constant 128 : i32
    %26 = vector.broadcast %c128_i32 : i32 to vector<8x128xi32>
    %27 = arith.select %25, %3, %26 : vector<8x128xi1>, vector<8x128xi32>
    %cst_8 = arith.constant dense<2147483647> : vector<8xi32>
    %28 = vector.multi_reduction <minsi>, %27, %cst_8 [1] : vector<8x128xi32> to vector<8xi32>
    %29 = vector.shape_cast %28 : vector<8xi32> to vector<8x1xi32>
    %30 = vector.broadcast %29 : vector<8x1xi32> to vector<8x128xi32>
    %31 = arith.cmpi eq, %3, %30 : vector<8x128xi32>
    %cst_9 = arith.constant -1.000000e+00 : f32
    %32 = vector.broadcast %cst_9 : f32 to vector<8x128xf32>
    %33 = arith.select %31, %32, %21 : vector<8x128xi1>, vector<8x128xf32>
    %cst_10 = arith.constant dense<0xFF800000> : vector<8xf32>
    %34 = vector.multi_reduction <maximumf>, %33, %cst_10 [1] : vector<8x128xf32> to vector<8xf32>
    %35 = vector.shape_cast %34 : vector<8xf32> to vector<8x1xf32>
    %36 = vector.broadcast %35 : vector<8x1xf32> to vector<8x128xf32>
    %37 = arith.cmpf oeq, %33, %36 : vector<8x128xf32>
    %c128_i32_11 = arith.constant 128 : i32
    %38 = vector.broadcast %c128_i32_11 : i32 to vector<8x128xi32>
    %39 = arith.select %37, %3, %38 : vector<8x128xi1>, vector<8x128xi32>
    %cst_12 = arith.constant dense<2147483647> : vector<8xi32>
    %40 = vector.multi_reduction <minsi>, %39, %cst_12 [1] : vector<8x128xi32> to vector<8xi32>
    %41 = vector.shape_cast %40 : vector<8xi32> to vector<8x1xi32>
    %42 = arith.addf %23, %35 : vector<8x1xf32>
    %cst_13 = arith.constant 9.99999968E-21 : f32
    %43 = vector.broadcast %cst_13 : f32 to vector<8x1xf32>
    %44 = arith.addf %42, %43 : vector<8x1xf32>
    %45 = tpu.reciprocal %44 {approx = true} : vector<8x1xf32> -> vector<8x1xf32>
    %46 = arith.mulf %44, %45 : vector<8x1xf32>
    %cst_14 = arith.constant 2.000000e+00 : f32
    %47 = vector.broadcast %cst_14 : f32 to vector<8x1xf32>
    %48 = arith.subf %47, %46 : vector<8x1xf32>
    %49 = arith.mulf %45, %48 : vector<8x1xf32>
    %50 = arith.mulf %23, %49 : vector<8x1xf32>
    %51 = arith.mulf %35, %49 : vector<8x1xf32>
    %52 = tpu.iota {dimensions = array<i32: 1>} : vector<8x128xi32>
    %cst_15 = arith.constant 0.000000e+00 : f32
    %53 = vector.broadcast %cst_15 : f32 to vector<8x128xf32>
    %c0_i32 = arith.constant 0 : i32
    %54 = vector.broadcast %c0_i32 : i32 to vector<8x128xi32>
    %c0_i32_16 = arith.constant 0 : i32
    %55 = vector.broadcast %c0_i32_16 : i32 to vector<8x128xi32>
    %56 = arith.cmpi eq, %52, %55 : vector<8x128xi32>
    %57 = vector.shape_cast %50 : vector<8x1xf32> to vector<8x1xf32>
    %58 = vector.broadcast %57 : vector<8x1xf32> to vector<8x128xf32>
    %59 = arith.select %56, %58, %53 : vector<8x128xi1>, vector<8x128xf32>
    %c0_i32_17 = arith.constant 0 : i32
    %60 = vector.broadcast %c0_i32_17 : i32 to vector<8x128xi32>
    %61 = arith.cmpi eq, %52, %60 : vector<8x128xi32>
    %62 = vector.shape_cast %29 : vector<8x1xi32> to vector<8x1xi32>
    %63 = vector.broadcast %62 : vector<8x1xi32> to vector<8x128xi32>
    %64 = arith.select %61, %63, %54 : vector<8x128xi1>, vector<8x128xi32>
    %c1_i32 = arith.constant 1 : i32
    %65 = vector.broadcast %c1_i32 : i32 to vector<8x128xi32>
    %66 = arith.cmpi eq, %52, %65 : vector<8x128xi32>
    %67 = vector.shape_cast %51 : vector<8x1xf32> to vector<8x1xf32>
    %68 = vector.broadcast %67 : vector<8x1xf32> to vector<8x128xf32>
    %69 = arith.select %66, %68, %59 : vector<8x128xi1>, vector<8x128xf32>
    %c1_i32_18 = arith.constant 1 : i32
    %70 = vector.broadcast %c1_i32_18 : i32 to vector<8x128xi32>
    %71 = arith.cmpi eq, %52, %70 : vector<8x128xi32>
    %72 = vector.shape_cast %41 : vector<8x1xi32> to vector<8x1xi32>
    %73 = vector.broadcast %72 : vector<8x1xi32> to vector<8x128xi32>
    %74 = arith.select %71, %73, %64 : vector<8x128xi1>, vector<8x128xi32>
    %c0_19 = arith.constant 0 : index
    %c0_20 = arith.constant 0 : index
    %75 = vector.load %arg3[%c0_19, %c0_20] : memref<8x128xf32, #tpu.memory_space<vmem>>, vector<8x128xf32>
    tpu.vector_store %arg3[%c0_19, %c0_20], %69 {strides = array<i32>} : memref<8x128xf32, #tpu.memory_space<vmem>>, vector<8x128xf32>,
    %c0_21 = arith.constant 0 : index
    %c0_22 = arith.constant 0 : index
    %76 = vector.load %arg4[%c0_21, %c0_22] : memref<8x128xi32, #tpu.memory_space<vmem>>, vector<8x128xi32>
    tpu.vector_store %arg4[%c0_21, %c0_22], %74 {strides = array<i32>} : memref<8x128xi32, #tpu.memory_space<vmem>>, vector<8x128xi32>,
    %c8_i32_23 = arith.constant 8 : i32
    %77 = arith.muli %arg0, %c8_i32_23 : i32
    %78 = tpu.iota {dimensions = array<i32: 1>} : vector<2x8xi32>
    %79 = vector.broadcast %77 : i32 to vector<2x8xi32>
    %80 = arith.addi %79, %78 : vector<2x8xi32>
    %81 = tpu.iota {dimensions = array<i32: 0>} : vector<2x8xi32>
    %c8_i32_24 = arith.constant 8 : i32
    %82 = vector.broadcast %c8_i32_24 : i32 to vector<2x8xi32>
    %83 = arith.muli %81, %82 : vector<2x8xi32>
    %84 = arith.cmpi sge, %80, %83 : vector<2x8xi32>
    %c8_i32_25 = arith.constant 8 : i32
    %85 = vector.broadcast %c8_i32_25 : i32 to vector<2x8xi32>
    %86 = arith.addi %83, %85 : vector<2x8xi32>
    %87 = arith.cmpi slt, %80, %86 : vector<2x8xi32>
    %88 = arith.andi %84, %87 : vector<2x8xi1>
    %c16_i32 = arith.constant 16 : i32
    %89 = vector.broadcast %c16_i32 : i32 to vector<2x8xi32>
    %90 = arith.cmpi slt, %80, %89 : vector<2x8xi32>
    %91 = arith.andi %88, %90 : vector<2x8xi1>
    %cst_26 = arith.constant 1.000000e+00 : f32
    %cst_27 = arith.constant 0.000000e+00 : f32
    %92 = vector.broadcast %cst_26 : f32 to vector<2x8xf32>
    %93 = vector.broadcast %cst_27 : f32 to vector<2x8xf32>
    %94 = arith.select %91, %92, %93 : vector<2x8xi1>, vector<2x8xf32>
    %cst_28 = arith.constant dense<0.000000e+00> : vector<2x128xf32>
    %95 = tpu.matmul %94, %21, %cst_28 {dimension_numbers = #tpu.dot_dimension_numbers<[1], [0], [0], [1], [0, 0, 1, 1], [], []>} : vector<2x8xf32>, vector<8x128xf32>, vector<2x128xf32> -> vector<2x128xf32>
    %c0_29 = arith.constant 0 : index
    %c0_30 = arith.constant 0 : index
    %c0_31 = arith.constant 0 : index
    %96 = vector.load %arg5[%c0_29, %c0_30, %c0_31] : memref<1x2x128xf32, #tpu.memory_space<vmem>>, vector<1x2x128xf32>
    %97 = vector.shape_cast %96 : vector<1x2x128xf32> to vector<2x128xf32>
    %98 = vector.shape_cast %95 : vector<2x128xf32> to vector<1x2x128xf32>
    tpu.vector_store %arg5[%c0_29, %c0_30, %c0_31], %98 {strides = array<i32>} : memref<1x2x128xf32, #tpu.memory_space<vmem>>, vector<1x2x128xf32>,
    return
  }
  func.func @transform_0(%arg0: i32) -> (i32, i32) {
    %c0_i32 = arith.constant 0 : i32
    %c0_i32_0 = arith.constant 0 : i32
    return %arg0, %c0_i32 : i32, i32
  }
  func.func @transform_1(%arg0: i32) -> (i32, i32) {
    %c0_i32 = arith.constant 0 : i32
    %c0_i32_0 = arith.constant 0 : i32
    %c0_i32_1 = arith.constant 0 : i32
    return %c0_i32, %c0_i32_0 : i32, i32
  }
  func.func @transform_2(%arg0: i32) -> (i32, i32) {
    %c0_i32 = arith.constant 0 : i32
    %c0_i32_0 = arith.constant 0 : i32
    return %arg0, %c0_i32 : i32, i32
  }
  func.func @transform_3(%arg0: i32) -> (i32, i32) {
    %c0_i32 = arith.constant 0 : i32
    %c0_i32_0 = arith.constant 0 : i32
    return %arg0, %c0_i32 : i32, i32
  }
  func.func @transform_4(%arg0: i32) -> (i32, i32, i32) {
    %c0_i32 = arith.constant 0 : i32
    %c0_i32_0 = arith.constant 0 : i32
    %c0_i32_1 = arith.constant 0 : i32
    return %arg0, %c0_i32, %c0_i32_0 : i32, i32, i32
  }
}

</mosaic_0001>

<llo_original>
// kernel: tpu_custom_call.1
$region0: #{tpu_custom_call.1}
  #allocation0 [shape = 'u32[]', space=smem, size = 0x4, offset = 0x4, fixed_abs, tag = 'smem constant byte address 0x4 - core index']
  #allocation1 [shape = 'u32[144,128]{1,0:T(1,128)}', space=vmem, size = 0x12000, scoped, tag = 'internal scratch']
  %s0 = inlined_call_operand.hbm [shape: bf16[16,32], index: 0, kind: input, shape index: {}]
  %s1 = inlined_call_operand.hbm [shape: bf16[32,128], index: 1, kind: input, shape index: {}]
  %s2 = inlined_call_operand.hbm [shape: f32[16,128], index: 2, kind: output, shape index: {0}]
  %s3 = inlined_call_operand.hbm [shape: s32[16,128], index: 3, kind: output, shape index: {1}]
  %s4 = inlined_call_operand.hbm [shape: f32[2,2,128], index: 4, kind: output, shape index: {2}]
  %5 = xla_tuple %s2, %s3, %s4
  %s6 = sld [smem:[#allocation0]]
  $region65: #{tpu_custom_call.1} parent=0
    _
  %s8 = ssub.s32 1, %s6
  %s9 = scalar_select 0, %s8, %s6
  $region1: #{tpu_custom_call.1} parent=0
    #allocation2 [shape = 'u8[4096]{0}', space=vmem, size = 0x1000, scoped, tag = 'input window, operand 0']
    #allocation3 [shape = 's32[2]{0}', space=sflag, size = 0x8, scoped, tag = 'scoped memory for tpu_custom_call.1']
    #allocation4 [shape = 's32[2]{0}', space=sflag, size = 0x8, scoped, tag = 'scoped memory for tpu_custom_call.1']
    #allocation5 [shape = 'u8[8192]{0}', space=vmem, size = 0x2000, scoped, tag = 'input window, operand 1, single buffered']
    #allocation6 [shape = 's32[1]{0}', space=sflag, size = 0x4, scoped, tag = 'scoped memory for tpu_custom_call.1']
    #allocation7 [shape = 'u8[8192]{0}', space=vmem, size = 0x2000, scoped, tag = 'output window, operand 0']
    #allocation8 [shape = 'u8[8192]{0}', space=vmem, size = 0x2000, scoped, tag = 'output window, operand 1']
    #allocation9 [shape = 's32[2]{0}', space=sflag, size = 0x8, scoped, tag = 'scoped memory for tpu_custom_call.1']
    #allocation10 [shape = 'u8[2048]{0}', space=vmem, size = 0x800, scoped, tag = 'output window, operand 2']
    %10 = vsyncpa [#allocation3], 0
    %s11 = scalar_lea.sflag [#allocation3], 1
    %12 = vsyncpa %s11, 0
    %13 = vsyncpa [#allocation6], 0
    %14 = vsyncpa [#allocation4], 0
    %s15 = scalar_lea.sflag [#allocation4], 1
    %16 = vsyncpa %s15, 0
    %17 = vsyncpa [#allocation9], 0
    %s18 = scalar_lea.sflag [#allocation9], 1
    %19 = vsyncpa %s18, 0
    loop: start=0, step=1, limit=4
    $region2: #{tpu_custom_call.1} parent=1 // loop_pre_header
      _
    $region3: #{tpu_custom_call.1} parent=1 // loop_header
      %s21 = sphi 0, %s25
      %p22 = scmp.ge.s32.totalorder %s21, 4
      %s31 = sphi 0, %s33
      %s34 = sphi 0, %s31
      %s35 = sphi 0, %s34
      %s51 = sphi 0, %s35
      %s55 = sphi 0, %s55
      %s57 = sphi 0, %s55
      %s58 = sphi 0, %s57
      %s72 = sphi 0, %s58
      %s78 = sphi 0, %s80
      %s81 = sphi 0, %s78
      %s82 = sphi 0, %s81
      %s98 = sphi 0, %s82
      %s104 = sphi 0, %s106
      %s107 = sphi 0, %s104
      %s108 = sphi 0, %s107
      %s124 = sphi 0, %s108
      %s130 = sphi 0, %s132
      %s133 = sphi 0, %s130
      %s134 = sphi 0, %s133
      %s150 = sphi 0, %s134
    $region4: #{tpu_custom_call.1} parent=1 // loop_header_branch
      %24 = sbr.rel (%p22) target = $region8
    $region5: #{tpu_custom_call.1} parent=1 // loop_body
      %s26 = ssub.s32 %s21, 1
      %s27 = ssub.s32 %s21, 2
      %s28 = sadd.s32 %s21, 1
      %s29 = ssub.s32 %s21, %s28
      %p30 = scmp.eq.s32.totalorder %s29, 0
      %s32 = sadd.s32 %s31, 1
      %s33 = scalar_select %p30, %s31, %s32
      %p36 = pneg %p30
      %p37 = scmp.eq.s32.totalorder %s21, 1
      %p38 = por %p36, %p37
      %p39 = scmp.ne.s32.totalorder %s31, %s34
      %p40 = scmp.eq.s32.totalorder %s21, 0
      %p41 = por %p39, %p40
      %p42 = scmp.ne.s32.totalorder %s31, %s34
      %p43 = scmp.eq.s32.totalorder %s26, 1
      %p44 = por %p42, %p43
      %p45 = scmp.ne.s32.totalorder %s34, %s35
      %p46 = scmp.eq.s32.totalorder %s26, 0
      %p47 = por %p45, %p46
      %p48 = scmp.ne.s32.totalorder %s34, %s35
      %p49 = scmp.eq.s32.totalorder %s27, 1
      %p50 = por %p48, %p49
      %p52 = scmp.ne.s32.totalorder %s35, %s51
      %p53 = scmp.eq.s32.totalorder %s27, 0
      %p54 = por %p52, %p53
      %s56 = sadd.s32 %s55, 1
      %p59 = scmp.eq.s32.totalorder %s21, 1
      %p60 = scmp.ne.s32.totalorder %s55, %s57
      %p61 = scmp.eq.s32.totalorder %s21, 0
      %p62 = por %p60, %p61
      %p63 = scmp.ne.s32.totalorder %s55, %s57
      %p64 = scmp.eq.s32.totalorder %s26, 1
      %p65 = por %p63, %p64
      %p66 = scmp.ne.s32.totalorder %s57, %s58
      %p67 = scmp.eq.s32.totalorder %s26, 0
      %p68 = por %p66, %p67
      %p69 = scmp.ne.s32.totalorder %s57, %s58
      %p70 = scmp.eq.s32.totalorder %s27, 1
      %p71 = por %p69, %p70
      %p73 = scmp.ne.s32.totalorder %s58, %s72
      %p74 = scmp.eq.s32.totalorder %s27, 0
      %p75 = por %p73, %p74
      %s76 = ssub.s32 %s21, %s28
      %p77 = scmp.eq.s32.totalorder %s76, 0
      %s79 = sadd.s32 %s78, 1
      %s80 = scalar_select %p77, %s78, %s79
      %p83 = pneg %p77
      %p84 = scmp.eq.s32.totalorder %s21, 1
      %p85 = por %p83, %p84
      %p86 = scmp.ne.s32.totalorder %s78, %s81
      %p87 = scmp.eq.s32.totalorder %s21, 0
      %p88 = por %p86, %p87
      %p89 = scmp.ne.s32.totalorder %s78, %s81
      %p90 = scmp.eq.s32.totalorder %s26, 1
      %p91 = por %p89, %p90
      %p92 = scmp.ne.s32.totalorder %s81, %s82
      %p93 = scmp.eq.s32.totalorder %s26, 0
      %p94 = por %p92, %p93
      %p95 = scmp.ne.s32.totalorder %s81, %s82
      %p96 = scmp.eq.s32.totalorder %s27, 1
      %p97 = por %p95, %p96
      %p99 = scmp.ne.s32.totalorder %s82, %s98
      %p100 = scmp.eq.s32.totalorder %s27, 0
      %p101 = por %p99, %p100
      %s102 = ssub.s32 %s21, %s28
      %p103 = scmp.eq.s32.totalorder %s102, 0
      %s105 = sadd.s32 %s104, 1
      %s106 = scalar_select %p103, %s104, %s105
      %p109 = pneg %p103
      %p110 = scmp.eq.s32.totalorder %s21, 1
      %p111 = por %p109, %p110
      %p112 = scmp.ne.s32.totalorder %s104, %s107
      %p113 = scmp.eq.s32.totalorder %s21, 0
      %p114 = por %p112, %p113
      %p115 = scmp.ne.s32.totalorder %s104, %s107
      %p116 = scmp.eq.s32.totalorder %s26, 1
      %p117 = por %p115, %p116
      %p118 = scmp.ne.s32.totalorder %s107, %s108
      %p119 = scmp.eq.s32.totalorder %s26, 0
      %p120 = por %p118, %p119
      %p121 = scmp.ne.s32.totalorder %s107, %s108
      %p122 = scmp.eq.s32.totalorder %s27, 1
      %p123 = por %p121, %p122
      %p125 = scmp.ne.s32.totalorder %s108, %s124
      %p126 = scmp.eq.s32.totalorder %s27, 0
      %p127 = por %p125, %p126
      %s128 = ssub.s32 %s21, %s28
      %p129 = scmp.eq.s32.totalorder %s128, 0
      %s131 = sadd.s32 %s130, 1
      %s132 = scalar_select %p129, %s130, %s131
      %p135 = pneg %p129
      %p136 = scmp.eq.s32.totalorder %s21, 1
      %p137 = por %p135, %p136
      %p138 = scmp.ne.s32.totalorder %s130, %s133
      %p139 = scmp.eq.s32.totalorder %s21, 0
      %p140 = por %p138, %p139
      %p141 = scmp.ne.s32.totalorder %s130, %s133
      %p142 = scmp.eq.s32.totalorder %s26, 1
      %p143 = por %p141, %p142
      %p144 = scmp.ne.s32.totalorder %s133, %s134
      %p145 = scmp.eq.s32.totalorder %s26, 0
      %p146 = por %p144, %p145
      %p147 = scmp.ne.s32.totalorder %s133, %s134
      %p148 = scmp.eq.s32.totalorder %s27, 1
      %p149 = por %p147, %p148
      %p151 = scmp.ne.s32.totalorder %s134, %s150
      %p152 = scmp.eq.s32.totalorder %s27, 0
      %p153 = por %p151, %p152
      %p154 = scmp.le.s32.totalorder 1, %s21
      %p155 = scmp.lt.s32.totalorder %s21, 3
      %p156 = pnand %p154, %p155
      %p157 = pneg %p156
      // Predicated region
      $region9: #{tpu_custom_call.1} parent=5 // pred_check
        _
      $region10: #{tpu_custom_call.1} parent=5 // pred_check_branch
        %159 = sbr.rel (%p156) target = $region12
      $region11: #{tpu_custom_call.1} parent=5 // pred_region
        %s160 = ssub.s32 %s21, 1
        // Predicated region
        $region13: #{tpu_custom_call.1} parent=11 // pred_check
          %p161 = pneg %p68
        $region14: #{tpu_custom_call.1} parent=11 // pred_check_branch
          %163 = sbr.rel (%p161) target = $region16
        $region15: #{tpu_custom_call.1} parent=11 // pred_region
          %s165 = ssub.s32 256, 256
          %166 = vsyncadd [#allocation6], %s165
          %s167 = sshll.u32 [#allocation5], 4
          %s168 = int_to_ptr.vmem [resolvable:$true] %s167
          %173 = dma.hbm_to_vmem [thread:$0]  %s1, 256, %s168, [#allocation6], 64, 64, 4
        $region16: #{tpu_custom_call.1} parent=11 // pred_fallthru
          _
      $region12: #{tpu_custom_call.1} parent=5 // pred_fallthru
        _
      %p174 = scmp.lt.s32.totalorder %s21, 2
      // Predicated region
      $region17: #{tpu_custom_call.1} parent=5 // pred_check
        %p175 = pneg %p174
      $region18: #{tpu_custom_call.1} parent=5 // pred_check_branch
        %177 = sbr.rel (%p175) target = $region20
      $region19: #{tpu_custom_call.1} parent=5 // pred_region
        // Predicated region
        $region21: #{tpu_custom_call.1} parent=19 // pred_check
          %p178 = pneg %p41
        $region22: #{tpu_custom_call.1} parent=19 // pred_check_branch
          %180 = sbr.rel (%p178) target = $region24
        $region23: #{tpu_custom_call.1} parent=19 // pred_region
          %s181 = sand.u32 %s31, 1
          %s182 = scalar_lea.sflag [#allocation3], %s181
          %s183 = sand.u32 %s31, 1
          %s184 = smul.addr %s183, 4
          %s185 = scalar_lea.vmem [#allocation2], %s184
          %s187 = ssub.s32 64, 64
          %188 = vsyncadd %s182, %s187
          %s189 = smul.addr %s21, 64
          %s190 = scalar_lea.hbm %s0, %s189
          %s192 = sshll.u32 %s185, 4
          %s193 = int_to_ptr.vmem [resolvable:$true] %s192
          %195 = dma.hbm_to_vmem [thread:$0]  %s190, 64, %s193, %s182
        $region24: #{tpu_custom_call.1} parent=19 // pred_fallthru
          _
      $region20: #{tpu_custom_call.1} parent=5 // pred_fallthru
        _
      %p196 = scmp.le.s32.totalorder 1, %s21
      %p197 = scmp.lt.s32.totalorder %s21, 3
      %p198 = pnand %p196, %p197
      %p199 = pneg %p198
      // Predicated region
      $region25: #{tpu_custom_call.1} parent=5 // pred_check
        _
      $region26: #{tpu_custom_call.1} parent=5 // pred_check_branch
        %201 = sbr.rel (%p198) target = $region28
      $region27: #{tpu_custom_call.1} parent=5 // pred_region
        %s202 = ssub.s32 %s21, 1
        %s203 = sand.u32 %s34, 1
        %s204 = scalar_lea.sflag [#allocation3], %s203
        %s205 = sand.u32 %s34, 1
        %s206 = smul.addr %s205, 4
        %s207 = scalar_lea.vmem [#allocation2], %s206
        // Predicated region
        $region29: #{tpu_custom_call.1} parent=27 // pred_check
          %p208 = pneg %p47
        $region30: #{tpu_custom_call.1} parent=27 // pred_check_branch
          %210 = sbr.rel (%p208) target = $region32
        $region31: #{tpu_custom_call.1} parent=27 // pred_region
          %211 = dma.done %s204, 64
        $region32: #{tpu_custom_call.1} parent=27 // pred_fallthru
          _
        // Predicated region
        $region33: #{tpu_custom_call.1} parent=27 // pred_check
          %p212 = pneg %p68
        $region34: #{tpu_custom_call.1} parent=27 // pred_check_branch
          %214 = sbr.rel (%p212) target = $region36
        $region35: #{tpu_custom_call.1} parent=27 // pred_region
          %215 = dma.done [#allocation6], 256
        $region36: #{tpu_custom_call.1} parent=27 // pred_fallthru
          _
        %s216 = sand.u32 %s34, 1
        %s217 = scalar_lea.sflag [#allocation3], %s216
        %s218 = sand.u32 %s34, 1
        %s219 = smul.addr %s218, 4
        %s220 = scalar_lea.vmem [#allocation2], %s219
        %p221 = pneg %p47
        %p222 = pneg %p44
        %p223 = pneg %p68
        %p224 = pneg %p65
        %p225 = pneg %p94
        %p226 = pneg %p91
        %s227 = sand.u32 %s81, 1
        %s228 = scalar_lea.sflag [#allocation4], %s227
        %s229 = sand.u32 %s81, 1
        %s230 = smul.addr %s229, 8
        %s231 = scalar_lea.vmem [#allocation7], %s230
        %p232 = pneg %p120
        %p233 = pneg %p117
        %s234 = sand.u32 %s26, 1
        %s235 = scalar_lea.sflag [#allocation9], %s234
        %s236 = sand.u32 %s107, 1
        %s237 = smul.addr %s236, 8
        %s238 = scalar_lea.vmem [#allocation8], %s237
        %p239 = pneg %p146
        %p240 = pneg %p143
        %s241 = sand.u32 %s26, 1
        %s242 = scalar_lea.sflag [#allocation9], %s241
        %s243 = sand.u32 %s133, 1
        %s244 = smul.addr %s243, 2
        %s245 = scalar_lea.vmem [#allocation10], %s244
        %v247 = vld [vmem:[%s207] sm:$0xf]
        %v248 = vld [vmem:[#allocation5] sm:$0xf]
        %v249 = vld [vmem:[#allocation5 + $0x4] sm:$0xf]
        %v250 = vld [vmem:[#allocation5 + $0x8] sm:$0xf]
        %v251 = vld [vmem:[#allocation5 + $0xc] sm:$0xf]
        %v256 = vunpack.c.l.b16 %v248
        %v257 = vunpack.c.l.b16 %v249
        %v258 = vunpack.c.l.b16 %v250
        %v259 = vunpack.c.l.b16 %v251
        %v260 = vpack.c.b16 %v257, %v256
        %v261 = vpack.c.b16 %v259, %v258
        %vm264 = vcmask 261120
        %v266 = vsel %vm264, %v247, 0
        %268 = vmatprep.subr.bf16.mxu0 0
        %269 = vmatpush1.bf16.msra.mxu0 %v260
        %270 = vmatprep.subr.bf16.mxu0 0
        %271 = vmatpush1.bf16.msra.mxu0 %v261
        %272 = vmatprep.subr.bf16.mxu0 0
        %273 = vmatpush1.bf16.msra.mxu0 0
        %274 = vmatprep.subr.bf16.mxu0 0
        %275 = vmatpush1.bf16.msra.mxu0 0
        %276 = vmatprep.subr.bf16.mxu0 0
        %277 = vmatpush1.bf16.msra.mxu0 0
        %278 = vmatprep.subr.bf16.mxu0 0
        %279 = vmatpush1.bf16.msra.mxu0 0
        %280 = vmatprep.subr.bf16.mxu0 0
        %281 = vmatpush1.bf16.msra.mxu0 0
        %282 = vmatprep.subr.bf16.mxu0 0
        %283 = vmatpush1.bf16.msra.mxu0 0
        %284 = vmatprep.subr.bf16.mxu0 0
        %285 = vmatpush1.bf16.msra.mxu0 0
        %286 = vmatprep.subr.bf16.mxu0 0
        %287 = vmatpush1.bf16.msra.mxu0 0
        %288 = vmatprep.subr.bf16.mxu0 0
        %289 = vmatpush1.bf16.msra.mxu0 0
        %290 = vmatprep.subr.bf16.mxu0 0
        %291 = vmatpush1.bf16.msra.mxu0 0
        %292 = vmatprep.subr.bf16.mxu0 0
        %293 = vmatpush1.bf16.msra.mxu0 0
        %294 = vmatprep.subr.bf16.mxu0 0
        %295 = vmatpush1.bf16.msra.mxu0 0
        %296 = vmatprep.subr.bf16.mxu0 0
        %297 = vmatpush1.bf16.msra.mxu0 0
        %298 = vmatprep.subr.bf16.mxu0 0
        %299 = vmatpush1.bf16.msra.mxu0 0
        %300 = vmatprep.mubr.bf16.mxu0 0
        %301 = vmatmul.mubr.bf16.gmra.mrb[0].mxu0 %v266
        %v302 = vpop.f32.mrb[0].mxu0
        %v303 = vadd.f32 0.0, %v302
        %v304 = vpop.f32.mrb[0].mxu0
        %v305 = vpop.f32.mrb[0].mxu0
        %v306 = vpop.f32.mrb[0].mxu0
        %307 = vdwg.mxu0
        %v308 = vlaneseq
        %v309 = vand.u32 %v308, 127
        %vm310 = vcmp.lt.s32.totalorder %v309, 8
        %v311 = vsel %vm310, %v303, -inf
        %312 = vmax.xlane.f32.xlu0 %v311
        %v313 = vpop.xlane.xlu0 %312
        %v314 = vsub.f32 %v311, %v313
        %v315 = vmul.f32 %v314, 1.442695
        %v316 = vpow.pop %v315
        %317 = vadd.xlane.f32.xlu0 %v316
        %v318 = vpop.xlane.xlu0 %317
        %v319 = vrcp.pop %v318
        %v320 = vmul.f32 %v318, %v319
        %v321 = vsub.f32 2.0, %v320
        %v322 = vmul.f32 %v319, %v321
        %v323 = vmul.f32 %v316, %v322
        %324 = vmax.xlane.f32.xlu0 %v323
        %v325 = vpop.xlane.xlu0 %324
        %vm326 = vcmp.eq.f32.partialorder %v323, %v325
        %v327 = vsel %vm326, %v309, 128
        %v328 = vand.u32 %v327, 65535
        %v329 = vshra.s32 %v327, 16
        %v330 = vcvt.s32.f32 %v328
        %v331 = vcvt.s32.f32 %v329
        %332 = vmin.xlane.f32.xlu0 %v331
        %v333 = vpop.xlane.xlu0 %332
        %vm334 = vcmp.eq.f32.partialorder %v331, %v333
        %v335 = vsel %vm334, %v330, inf
        %336 = vmin.xlane.f32.xlu0 %v335
        %v337 = vpop.xlane.xlu0 %336
        %v338 = vcvt.f32.s32 %v337
        %v339 = vcvt.f32.s32 %v333
        %v340 = vshll.u32 %v339, 16
        %v341 = vadd.s32 %v340, %v338
        %vm342 = vcmp.eq.s32.totalorder %v309, %v341
        %v343 = vsel %vm342, -1.0, %v323
        %344 = vmax.xlane.f32.xlu0 %v343
        %v345 = vpop.xlane.xlu0 %344
        %vm346 = vcmp.eq.f32.partialorder %v343, %v345
        %v347 = vsel %vm346, %v309, 128
        %v348 = vand.u32 %v347, 65535
        %v349 = vshra.s32 %v347, 16
        %v350 = vcvt.s32.f32 %v348
        %v351 = vcvt.s32.f32 %v349
        %352 = vmin.xlane.f32.xlu0 %v351
        %v353 = vpop.xlane.xlu0 %352
        %vm354 = vcmp.eq.f32.partialorder %v351, %v353
        %v355 = vsel %vm354, %v350, inf
        %356 = vmin.xlane.f32.xlu0 %v355
        %v357 = vpop.xlane.xlu0 %356
        %v358 = vcvt.f32.s32 %v357
        %v359 = vcvt.f32.s32 %v353
        %v360 = vshll.u32 %v359, 16
        %v361 = vadd.s32 %v360, %v358
        %v362 = vadd.f32 %v325, %v345
        %v363 = vadd.f32 %v362, 1e-20
        %v364 = vrcp.pop %v363
        %v365 = vmul.f32 %v363, %v364
        %v366 = vsub.f32 2.0, %v365
        %v367 = vmul.f32 %v364, %v366
        %v368 = vmul.f32 %v325, %v367
        %v369 = vmul.f32 %v345, %v367
        %vm370 = vcmp.eq.s32.totalorder %v309, 0
        %v371 = vsel %vm370, %v368, 0.0
        %v372 = vsel %vm370, %v341, 0
        %vm373 = vcmp.eq.s32.totalorder %v309, 1
        %v374 = vsel %vm373, %v369, %v371
        %v375 = vsel %vm373, %v361, %v372
        %376 = vst [vmem:[%s231] sm:$0xff] %v374
        %377 = vst [vmem:[%s238] sm:$0xff] %v375
        %s378 = smul.u32 %s26, 8
        %v379 = vstv %s378
        %v380 = vadd.s32 %v379, %v309
        %v381 = vlaneseq
        %v382 = vshrl.u32 %v381, 7
        %v383 = vmul.u32 %v382, 8
        %vm384 = vcmp.ge.s32.totalorder %v380, %v383
        %v385 = vadd.s32 %v383, 8
        %vm386 = vcmp.lt.s32.totalorder %v380, %v385
        %vm387 = vmand %vm384, %vm386
        %vm388 = vcmp.lt.s32.totalorder %v380, 16
        %vm389 = vmand %vm387, %vm388
        %v390 = vsel %vm389, 1.0, 0.0
        %vm391 = vcmask 64512
        %v393 = vsel %vm391, %v390, 0
        %395 = vmatprep.subr.mxu0 0.0
        %396 = vmatpush1.msra.mxu0 %v323
        %397 = vmatprep.subr.mxu0 0.0
        %398 = vmatpush1.msra.mxu0 0.0
        %399 = vmatprep.subr.mxu0 0.0
        %400 = vmatpush1.msra.mxu0 0.0
        %401 = vmatprep.subr.mxu0 0.0
        %402 = vmatpush1.msra.mxu0 0.0
        %403 = vmatprep.subr.mxu0 0.0
        %404 = vmatpush1.msra.mxu0 0.0
        %405 = vmatprep.subr.mxu0 0.0
        %406 = vmatpush1.msra.mxu0 0.0
        %407 = vmatprep.subr.mxu0 0.0
        %408 = vmatpush1.msra.mxu0 0.0
        %409 = vmatprep.subr.mxu0 0.0
        %410 = vmatpush1.msra.mxu0 0.0
        %411 = vmatprep.subr.mxu0 0.0
        %412 = vmatpush1.msra.mxu0 0.0
        %413 = vmatprep.subr.mxu0 0.0
        %414 = vmatpush1.msra.mxu0 0.0
        %415 = vmatprep.subr.mxu0 0.0
        %416 = vmatpush1.msra.mxu0 0.0
        %417 = vmatprep.subr.mxu0 0.0
        %418 = vmatpush1.msra.mxu0 0.0
        %419 = vmatprep.subr.mxu0 0.0
        %420 = vmatpush1.msra.mxu0 0.0
        %421 = vmatprep.subr.mxu0 0.0
        %422 = vmatpush1.msra.mxu0 0.0
        %423 = vmatprep.subr.mxu0 0.0
        %424 = vmatpush1.msra.mxu0 0.0
        %425 = vmatprep.subr.mxu0 0.0
        %426 = vmatpush1.msra.mxu0 0.0
        %427 = vmatprep.subr.mxu0 0.0
        %428 = vmatpush1.msra.mxu0 0.0
        %429 = vmatprep.subr.mxu0 0.0
        %430 = vmatpush1.msra.mxu0 0.0
        %431 = vmatprep.subr.mxu0 0.0
        %432 = vmatpush1.msra.mxu0 0.0
        %433 = vmatprep.subr.mxu0 0.0
        %434 = vmatpush1.msra.mxu0 0.0
        %435 = vmatprep.subr.mxu0 0.0
        %436 = vmatpush1.msra.mxu0 0.0
        %437 = vmatprep.subr.mxu0 0.0
        %438 = vmatpush1.msra.mxu0 0.0
        %439 = vmatprep.subr.mxu0 0.0
        %440 = vmatpush1.msra.mxu0 0.0
        %441 = vmatprep.subr.mxu0 0.0
        %442 = vmatpush1.msra.mxu0 0.0
        %443 = vmatprep.subr.mxu0 0.0
        %444 = vmatpush1.msra.mxu0 0.0
        %445 = vmatprep.subr.mxu0 0.0
        %446 = vmatpush1.msra.mxu0 0.0
        %447 = vmatprep.subr.mxu0 0.0
        %448 = vmatpush1.msra.mxu0 0.0
        %449 = vmatprep.subr.mxu0 0.0
        %450 = vmatpush1.msra.mxu0 0.0
        %451 = vmatprep.subr.mxu0 0.0
        %452 = vmatpush1.msra.mxu0 0.0
        %453 = vmatprep.subr.mxu0 0.0
        %454 = vmatpush1.msra.mxu0 0.0
        %455 = vmatprep.subr.mxu0 0.0
        %456 = vmatpush1.msra.mxu0 0.0
        %457 = vmatprep.subr.mxu0 0.0
        %458 = vmatpush1.msra.mxu0 0.0
        %459 = vmatprep.mubr.f32.mxu0 0.0
        %460 = vmatmul.mubr.f32.gmra.mrb[0].mxu0 %v393
        %v461 = vpop.f32.mrb[0].mxu0
        %v462 = vadd.f32 0.0, %v461
        %v463 = vpop.f32.mrb[0].mxu0
        %464 = vdwg.mxu0
        %465 = vst [vmem:[%s245] sm:$0x3] %v462
        %s466 = sand.u32 %s81, 1
        %s467 = scalar_lea.sflag [#allocation4], %s466
        %s468 = sand.u32 %s81, 1
        %s469 = smul.addr %s468, 8
        %s470 = scalar_lea.vmem [#allocation7], %s469
        %s471 = sand.u32 %s26, 1
        %s472 = scalar_lea.sflag [#allocation9], %s471
        %s473 = sand.u32 %s107, 1
        %s474 = smul.addr %s473, 8
        %s475 = scalar_lea.vmem [#allocation8], %s474
        %s476 = sand.u32 %s26, 1
        %s477 = scalar_lea.sflag [#allocation9], %s476
        %s478 = sand.u32 %s133, 1
        %s479 = smul.addr %s478, 2
        %s480 = scalar_lea.vmem [#allocation10], %s479
        // Predicated region
        $region37: #{tpu_custom_call.1} parent=27 // pred_check
          %p481 = pneg %p91
        $region38: #{tpu_custom_call.1} parent=27 // pred_check_branch
          %483 = sbr.rel (%p481) target = $region40
        $region39: #{tpu_custom_call.1} parent=27 // pred_region
          %s485 = ssub.s32 128, 128
          %486 = vsyncadd %s467, %s485
          %s487 = smul.addr %s26, 128
          %s488 = scalar_lea.hbm %s2, %s487
          %s490 = sshll.u32 %s470, 4
          %s491 = int_to_ptr.vmem [resolvable:$true] %s490
          %493 = dma.vmem_to_hbm [thread:$0]  %s491, 128, %s488, %s467
        $region40: #{tpu_custom_call.1} parent=27 // pred_fallthru
          _
        // Predicated region
        $region41: #{tpu_custom_call.1} parent=27 // pred_check
          %p494 = pneg %p117
        $region42: #{tpu_custom_call.1} parent=27 // pred_check_branch
          %496 = sbr.rel (%p494) target = $region44
        $region43: #{tpu_custom_call.1} parent=27 // pred_region
          %s498 = ssub.s32 128, 128
          %499 = vsyncadd %s472, %s498
          %s500 = smul.addr %s26, 128
          %s501 = scalar_lea.hbm %s3, %s500
          %s503 = sshll.u32 %s475, 4
          %s504 = int_to_ptr.vmem [resolvable:$true] %s503
          %506 = dma.vmem_to_hbm [thread:$0]  %s504, 128, %s501, %s472
        $region44: #{tpu_custom_call.1} parent=27 // pred_fallthru
          _
        // Predicated region
        $region45: #{tpu_custom_call.1} parent=27 // pred_check
          %p507 = pneg %p143
        $region46: #{tpu_custom_call.1} parent=27 // pred_check_branch
          %509 = sbr.rel (%p507) target = $region48
        $region47: #{tpu_custom_call.1} parent=27 // pred_region
          %s511 = ssub.s32 32, 32
          %512 = vsyncadd %s477, %s511
          %s513 = smul.addr %s26, 32
          %s514 = scalar_lea.hbm %s4, %s513
          %s516 = sshll.u32 %s480, 4
          %s517 = int_to_ptr.vmem [resolvable:$true] %s516
          %519 = dma.vmem_to_hbm [thread:$0]  %s517, 32, %s514, %s477
        $region48: #{tpu_custom_call.1} parent=27 // pred_fallthru
          _
      $region28: #{tpu_custom_call.1} parent=5 // pred_fallthru
        _
      %p520 = scmp.le.s32.totalorder 2, %s21
      // Predicated region
      $region49: #{tpu_custom_call.1} parent=5 // pred_check
        %p521 = pneg %p520
      $region50: #{tpu_custom_call.1} parent=5 // pred_check_branch
        %523 = sbr.rel (%p521) target = $region52
      $region51: #{tpu_custom_call.1} parent=5 // pred_region
        %s524 = ssub.s32 %s21, 2
        // Predicated region
        $region53: #{tpu_custom_call.1} parent=51 // pred_check
          %p525 = pneg %p97
        $region54: #{tpu_custom_call.1} parent=51 // pred_check_branch
          %527 = sbr.rel (%p525) target = $region56
        $region55: #{tpu_custom_call.1} parent=51 // pred_region
          %s528 = sand.u32 %s82, 1
          %s529 = scalar_lea.sflag [#allocation4], %s528
          %s530 = sand.u32 %s82, 1
          %s531 = smul.addr %s530, 8
          %s532 = scalar_lea.vmem [#allocation7], %s531
          %533 = dma.done %s529, 128
        $region56: #{tpu_custom_call.1} parent=51 // pred_fallthru
          _
        // Predicated region
        $region57: #{tpu_custom_call.1} parent=51 // pred_check
          %p534 = pneg %p123
        $region58: #{tpu_custom_call.1} parent=51 // pred_check_branch
          %536 = sbr.rel (%p534) target = $region60
        $region59: #{tpu_custom_call.1} parent=51 // pred_region
          %s537 = sand.u32 %s27, 1
          %s538 = scalar_lea.sflag [#allocation9], %s537
          %s539 = sand.u32 %s108, 1
          %s540 = smul.addr %s539, 8
          %s541 = scalar_lea.vmem [#allocation8], %s540
          %542 = dma.done %s538, 128
        $region60: #{tpu_custom_call.1} parent=51 // pred_fallthru
          _
        // Predicated region
        $region61: #{tpu_custom_call.1} parent=51 // pred_check
          %p543 = pneg %p149
        $region62: #{tpu_custom_call.1} parent=51 // pred_check_branch
          %545 = sbr.rel (%p543) target = $region64
        $region63: #{tpu_custom_call.1} parent=51 // pred_region
          %s546 = sand.u32 %s27, 1
          %s547 = scalar_lea.sflag [#allocation9], %s546
          %s548 = sand.u32 %s134, 1
          %s549 = smul.addr %s548, 2
          %s550 = scalar_lea.vmem [#allocation10], %s549
          %551 = dma.done %s547, 32
        $region64: #{tpu_custom_call.1} parent=51 // pred_fallthru
          _
      $region52: #{tpu_custom_call.1} parent=5 // pred_fallthru
        _
    $region6: #{tpu_custom_call.1} parent=1 // loop_footer
      %s25 = sadd.s32 1, %s21
    $region7: #{tpu_custom_call.1} parent=1 // loop_footer_branch
      %20 = sbr.rel target = $region3
    $region8: #{tpu_custom_call.1} parent=1 // loop_exit
      _
    %552 = vsyncpa [#allocation3], 1
    %s553 = scalar_lea.sflag [#allocation3], 1
    %554 = vsyncpa %s553, 1
    %555 = vsyncpa [#allocation6], 1
    %556 = vsyncpa [#allocation4], 1
    %s557 = scalar_lea.sflag [#allocation4], 1
    %558 = vsyncpa %s557, 1
    %559 = vsyncpa [#allocation9], 1
    %s560 = scalar_lea.sflag [#allocation9], 1
    %561 = vsyncpa %s560, 1

</llo_original>
